<compile_context>
chip_gen: v5e
topology: v5e:2x2
jax: 0.10.0
libtpu: 0.0.40
codegen_flags: <defaults>
</compile_context>

<pallas_src>
import functools
import math

import jax
import jax.numpy as jnp
from jax.experimental import pallas as pl
from jax.experimental.pallas import tpu as pltpu


def _round_up(n: int, m: int) -> int:
    return ((n + m - 1) // m) * m


# ----------------------------- fused Pallas kernel ---------------------------
def _levelnet_kernel(x_ref, w_ref, b_ref, out_ref, *,
                     num_layers: int, emit_ids: tuple, compute_dtype):
    """Fused LevelNet forward for one batch tile.

    x_ref  : [TB, P]    f32   padded flatten([t, x])
    w_ref  : [L, P, P]  bf16  padded, pre-transposed weights (w[li] = [Din, Dout])
    b_ref  : [L, 1, P]  f32   padded biases
    out_ref: [E, TB, P] f32   one 128-lane-dense slab per emitted tensor
    """
    h = x_ref[...]                                   # f32 [TB, P]
    slot = 0
    for li in range(num_layers):                     # static unroll (L = 2**level + 1)
        if li > 0:
            h = jnp.tanh(h)                          # activation BEFORE every layer but the first (f32)
        # bf16 MXU operands, f32 accumulation; padded K columns/rows are zero.
        y = jnp.dot(h.astype(compute_dtype), w_ref[li],
                    preferred_element_type=jnp.float32)
        h = y + b_ref[li]                            # bias add in f32, [TB,P] + [1,P]
        if li in emit_ids:                           # torch: `if i % 2 or level == 0`
            out_ref[slot] = h.astype(out_ref.dtype)
            slot += 1


# ------------------------------ parameters -----------------------------------
def init_levelnet_params(key, dim: int, dim_embed: int, level: int):
    """Raw torch-layout params, nn.Linear default init U(+-1/sqrt(fan_in))."""
    dim_in, dim_out = dim + 1, dim
    shapes = ([(dim_embed, dim_in)]
              + [(dim_embed, dim_embed) for _ in range(2 ** level - 1)]
              + [(dim_out, dim_embed)])
    raw = []
    for fan_out, fan_in in shapes:
        key, kw, kb = jax.random.split(key, 3)
        bound = 1.0 / math.sqrt(fan_in)
        w = jax.random.uniform(kw, (fan_out, fan_in), jnp.float32, -bound, bound)
        b = jax.random.uniform(kb, (fan_out,), jnp.float32, -bound, bound)
        raw.append((w, b))
    return raw


def pack_levelnet_params(raw, dim: int, dim_embed: int, level: int,
                         compute_dtype=jnp.bfloat16):
    """One-time prep: transpose to [Din, Dout], zero-pad to 128 lanes, stack."""
    L = len(raw)
    dim_in, dim_out = dim + 1, dim
    P = _round_up(max(dim_in, dim_embed, dim_out), 128)
    w_stack = jnp.zeros((L, P, P), jnp.float32)
    b_stack = jnp.zeros((L, 1, P), jnp.float32)
    for li, (w, b) in enumerate(raw):
        fan_out, fan_in = w.shape
        w_stack = w_stack.at[li, :fan_in, :fan_out].set(w.T)
        b_stack = b_stack.at[li, 0, :fan_out].set(b)
    # torch loop index i = li - 1 over dense_layers[1:]
    emit_ids = tuple(li for li in range(1, L)
                     if ((li - 1) % 2 == 1) or level == 0)
    return {
        "dim": dim, "dim_embed": dim_embed, "level": level,
        "w_stack": w_stack.astype(compute_dtype),   # bf16 MXU operands
        "b_stack": b_stack,                         # f32 bias
        "emit_ids": emit_ids,
    }


# ------------------------------ forward ---------------------------------------
def flatten_tx(t, x, dim_out: int):
    """Model.flatten: cat([t, x], dim=1) with t shaped [B, 1]."""
    B = x.shape[0]
    if t.ndim == 0 or t.shape[0] == 1:
        t = jnp.broadcast_to(jnp.reshape(t, (-1,))[:1], (B,))
    if t.ndim == 1:
        t = t[:, None]
    assert x.shape[-1] == dim_out
    assert t.shape == (B, 1)
    return jnp.concatenate([t, x], axis=1)


def levelnet_forward(packed, t, x, *, batch_tile: int = 256):
    """Fused LevelNet forward. Returns the list of out_tensors (torch order)."""
    dim, dim_embed = packed["dim"], packed["dim_embed"]
    w_stack, b_stack = packed["w_stack"], packed["b_stack"]
    emit_ids = packed["emit_ids"]
    L, P, _ = w_stack.shape
    E = len(emit_ids)

    x_in = flatten_tx(t, x, dim_out=dim)             # [B, dim+1] f32
    B = x_in.shape[0]

    TB = min(batch_tile, _round_up(B, 8))            # batch tile, multiple of 8
    B_pad = _round_up(B, TB)
    x_pad = jnp.zeros((B_pad, P), jnp.float32).at[:B, : dim + 1].set(x_in)

    kernel = functools.partial(
        _levelnet_kernel, num_layers=L, emit_ids=emit_ids,
        compute_dtype=w_stack.dtype)

    out = pl.pallas_call(
        kernel,
        out_shape=jax.ShapeDtypeStruct((E, B_pad, P), jnp.float32),
        grid_spec=pltpu.PrefetchScalarGridSpec(
            num_scalar_prefetch=0,
            grid=(B_pad // TB,),
            in_specs=[
                pl.BlockSpec((TB, P), lambda i: (i, 0)),       # batch-tiled input
                pl.BlockSpec((L, P, P), lambda i: (0, 0, 0)),  # weights: VMEM-resident
                pl.BlockSpec((L, 1, P), lambda i: (0, 0, 0)),  # biases:  VMEM-resident
            ],
            out_specs=pl.BlockSpec((E, TB, P), lambda i: (0, i, 0)),
        ),
        compiler_params=pltpu.CompilerParams(
            dimension_semantics=("parallel",),  # shard batch tiles across TCs on v7x
        ),
    )(x_pad, w_stack, b_stack)

    # Un-pad: intermediate emits are [B, dim_embed]; the final-layer emit is [B, dim].
    results = []
    for j in range(E):
        width = dim if emit_ids[j] == L - 1 else dim_embed
        results.append(out[j, :B, :width])
    return results


# ------------------------- pure-JAX reference ---------------------------------
def levelnet_forward_ref(raw, t, x, dim: int, level: int,
                         match_kernel_dtypes: bool = True):
    h = flatten_tx(t, x, dim_out=dim)
    outs = []
    for li, (w, b) in enumerate(raw):
        if li > 0:
            h = jnp.tanh(h)
        if match_kernel_dtypes:
            y = jnp.dot(h.astype(jnp.bfloat16), w.T.astype(jnp.bfloat16),
                        preferred_element_type=jnp.float32)
        else:
            y = h @ w.T
        h = y + b
        if li >= 1 and (((li - 1) % 2 == 1) or level == 0):
            outs.append(h)
    return outs


if __name__ == "__main__":
    dim, dim_embed, level, batch = 4, 32, 2, 2   # 2**level + 1 = 5 Linear layers

    key = jax.random.PRNGKey(0)
    key, kx, kt = jax.random.split(key, 3)
    x = jax.random.normal(kx, (batch, dim), jnp.float32)
    t = jax.random.uniform(kt, (batch,), jnp.float32)   # per-sample time

    raw = init_levelnet_params(jax.random.PRNGKey(0), dim, dim_embed, level)
    packed = pack_levelnet_params(raw, dim, dim_embed, level)

    outs = levelnet_forward(packed, t, x)
    outs = jax.block_until_ready(outs)

    ref_bf16 = levelnet_forward_ref(raw, t, x, dim, level, match_kernel_dtypes=True)
    ref_f32 = levelnet_forward_ref(raw, t, x, dim, level, match_kernel_dtypes=False)

    assert len(outs) == len(ref_bf16) == (1 if level == 0 else 2 ** (level - 1))
    for o, rb, rf in zip(outs, ref_bf16, ref_f32):
        assert o.shape == rb.shape, (o.shape, rb.shape)
        # exact-semantics check (same bf16-operand / f32-accumulate recipe)
        assert jnp.allclose(o, rb, atol=1e-4, rtol=1e-4), (o, rb)
        # loose check against full-f32 torch semantics (bf16 rounding only)
        assert jnp.allclose(o, rf, atol=5e-2, rtol=5e-2), (o, rf)

    print("KERNEL_OK")
</pallas_src>

<mosaic_0001>
module attributes {stable_mosaic.version = 11 : i64} {
  func.func @_levelnet_kernel(%arg0: i32, %arg1: memref<8x128xf32, #tpu.memory_space<vmem>>, %arg2: memref<5x128x128xbf16, #tpu.memory_space<vmem>>, %arg3: memref<5x1x128xf32, #tpu.memory_space<vmem>>, %arg4: memref<2x8x128xf32, #tpu.memory_space<vmem>>) attributes {dimension_semantics = [#tpu.dimension_semantics<parallel>], iteration_bounds = array<i64: 1>, scalar_prefetch = 0 : i64, scratch_operands = 0 : i64, tpu.core_type = #tpu.core_type<tc>, window_params = [{transform_indices = @transform_0, window_bounds = array<i64: 8, 128>}, {pipeline_mode = #tpu.pipeline_mode<synchronous>, transform_indices = @transform_1, window_bounds = array<i64: 5, 128, 128>}, {pipeline_mode = #tpu.pipeline_mode<synchronous>, transform_indices = @transform_2, window_bounds = array<i64: 5, 1, 128>}, {transform_indices = @transform_3, window_bounds = array<i64: 2, 8, 128>}]} {
    %c0 = arith.constant 0 : index
    %c0_0 = arith.constant 0 : index
    %0 = vector.load %arg1[%c0, %c0_0] : memref<8x128xf32, #tpu.memory_space<vmem>>, vector<8x128xf32>
    %1 = arith.truncf %0 : vector<8x128xf32> to vector<8x128xbf16>
    %c0_1 = arith.constant 0 : index
    %c0_2 = arith.constant 0 : index
    %c0_3 = arith.constant 0 : index
    %2 = vector.load %arg2[%c0_1, %c0_2, %c0_3] : memref<5x128x128xbf16, #tpu.memory_space<vmem>>, vector<1x128x128xbf16>
    %3 = vector.shape_cast %2 : vector<1x128x128xbf16> to vector<128x128xbf16>
    %cst = arith.constant dense<0.000000e+00> : vector<8x128xf32>
    %4 = tpu.matmul %1, %3, %cst {dimension_numbers = #tpu.dot_dimension_numbers<[1], [0], [0], [1], [0, 0, 1, 1], [], []>} : vector<8x128xbf16>, vector<128x128xbf16>, vector<8x128xf32> -> vector<8x128xf32>
    %c0_4 = arith.constant 0 : index
    %c0_5 = arith.constant 0 : index
    %c0_6 = arith.constant 0 : index
    %5 = vector.load %arg3[%c0_4, %c0_5, %c0_6] : memref<5x1x128xf32, #tpu.memory_space<vmem>>, vector<1x1x128xf32>
    %6 = vector.shape_cast %5 : vector<1x1x128xf32> to vector<1x128xf32>
    %7 = vector.broadcast %6 : vector<1x128xf32> to vector<8x128xf32>
    %8 = arith.addf %4, %7 : vector<8x128xf32>
    %9 = math.tanh %8 : vector<8x128xf32>
    %10 = arith.truncf %9 : vector<8x128xf32> to vector<8x128xbf16>
    %c1 = arith.constant 1 : index
    %c0_7 = arith.constant 0 : index
    %c0_8 = arith.constant 0 : index
    %11 = vector.load %arg2[%c1, %c0_7, %c0_8] : memref<5x128x128xbf16, #tpu.memory_space<vmem>>, vector<1x128x128xbf16>
    %12 = vector.shape_cast %11 : vector<1x128x128xbf16> to vector<128x128xbf16>
    %cst_9 = arith.constant dense<0.000000e+00> : vector<8x128xf32>
    %13 = tpu.matmul %10, %12, %cst_9 {dimension_numbers = #tpu.dot_dimension_numbers<[1], [0], [0], [1], [0, 0, 1, 1], [], []>} : vector<8x128xbf16>, vector<128x128xbf16>, vector<8x128xf32> -> vector<8x128xf32>
    %c1_10 = arith.constant 1 : index
    %c0_11 = arith.constant 0 : index
    %c0_12 = arith.constant 0 : index
    %14 = vector.load %arg3[%c1_10, %c0_11, %c0_12] : memref<5x1x128xf32, #tpu.memory_space<vmem>>, vector<1x1x128xf32>
    %15 = vector.shape_cast %14 : vector<1x1x128xf32> to vector<1x128xf32>
    %16 = vector.broadcast %15 : vector<1x128xf32> to vector<8x128xf32>
    %17 = arith.addf %13, %16 : vector<8x128xf32>
    %18 = math.tanh %17 : vector<8x128xf32>
    %19 = arith.truncf %18 : vector<8x128xf32> to vector<8x128xbf16>
    %c2 = arith.constant 2 : index
    %c0_13 = arith.constant 0 : index
    %c0_14 = arith.constant 0 : index
    %20 = vector.load %arg2[%c2, %c0_13, %c0_14] : memref<5x128x128xbf16, #tpu.memory_space<vmem>>, vector<1x128x128xbf16>
    %21 = vector.shape_cast %20 : vector<1x128x128xbf16> to vector<128x128xbf16>
    %cst_15 = arith.constant dense<0.000000e+00> : vector<8x128xf32>
    %22 = tpu.matmul %19, %21, %cst_15 {dimension_numbers = #tpu.dot_dimension_numbers<[1], [0], [0], [1], [0, 0, 1, 1], [], []>} : vector<8x128xbf16>, vector<128x128xbf16>, vector<8x128xf32> -> vector<8x128xf32>
    %c2_16 = arith.constant 2 : index
    %c0_17 = arith.constant 0 : index
    %c0_18 = arith.constant 0 : index
    %23 = vector.load %arg3[%c2_16, %c0_17, %c0_18] : memref<5x1x128xf32, #tpu.memory_space<vmem>>, vector<1x1x128xf32>
    %24 = vector.shape_cast %23 : vector<1x1x128xf32> to vector<1x128xf32>
    %25 = vector.broadcast %24 : vector<1x128xf32> to vector<8x128xf32>
    %26 = arith.addf %22, %25 : vector<8x128xf32>
    %c0_19 = arith.constant 0 : index
    %c0_20 = arith.constant 0 : index
    %c0_21 = arith.constant 0 : index
    %27 = vector.load %arg4[%c0_19, %c0_20, %c0_21] : memref<2x8x128xf32, #tpu.memory_space<vmem>>, vector<1x8x128xf32>
    %28 = vector.shape_cast %27 : vector<1x8x128xf32> to vector<8x128xf32>
    %29 = vector.shape_cast %26 : vector<8x128xf32> to vector<1x8x128xf32>
    tpu.vector_store %arg4[%c0_19, %c0_20, %c0_21], %29 {strides = array<i32>} : memref<2x8x128xf32, #tpu.memory_space<vmem>>, vector<1x8x128xf32>,
    %30 = math.tanh %26 : vector<8x128xf32>
    %31 = arith.truncf %30 : vector<8x128xf32> to vector<8x128xbf16>
    %c3 = arith.constant 3 : index
    %c0_22 = arith.constant 0 : index
    %c0_23 = arith.constant 0 : index
    %32 = vector.load %arg2[%c3, %c0_22, %c0_23] : memref<5x128x128xbf16, #tpu.memory_space<vmem>>, vector<1x128x128xbf16>
    %33 = vector.shape_cast %32 : vector<1x128x128xbf16> to vector<128x128xbf16>
    %cst_24 = arith.constant dense<0.000000e+00> : vector<8x128xf32>
    %34 = tpu.matmul %31, %33, %cst_24 {dimension_numbers = #tpu.dot_dimension_numbers<[1], [0], [0], [1], [0, 0, 1, 1], [], []>} : vector<8x128xbf16>, vector<128x128xbf16>, vector<8x128xf32> -> vector<8x128xf32>
    %c3_25 = arith.constant 3 : index
    %c0_26 = arith.constant 0 : index
    %c0_27 = arith.constant 0 : index
    %35 = vector.load %arg3[%c3_25, %c0_26, %c0_27] : memref<5x1x128xf32, #tpu.memory_space<vmem>>, vector<1x1x128xf32>
    %36 = vector.shape_cast %35 : vector<1x1x128xf32> to vector<1x128xf32>
    %37 = vector.broadcast %36 : vector<1x128xf32> to vector<8x128xf32>
    %38 = arith.addf %34, %37 : vector<8x128xf32>
    %39 = math.tanh %38 : vector<8x128xf32>
    %40 = arith.truncf %39 : vector<8x128xf32> to vector<8x128xbf16>
    %c4 = arith.constant 4 : index
    %c0_28 = arith.constant 0 : index
    %c0_29 = arith.constant 0 : index
    %41 = vector.load %arg2[%c4, %c0_28, %c0_29] : memref<5x128x128xbf16, #tpu.memory_space<vmem>>, vector<1x128x128xbf16>
    %42 = vector.shape_cast %41 : vector<1x128x128xbf16> to vector<128x128xbf16>
    %cst_30 = arith.constant dense<0.000000e+00> : vector<8x128xf32>
    %43 = tpu.matmul %40, %42, %cst_30 {dimension_numbers = #tpu.dot_dimension_numbers<[1], [0], [0], [1], [0, 0, 1, 1], [], []>} : vector<8x128xbf16>, vector<128x128xbf16>, vector<8x128xf32> -> vector<8x128xf32>
    %c4_31 = arith.constant 4 : index
    %c0_32 = arith.constant 0 : index
    %c0_33 = arith.constant 0 : index
    %44 = vector.load %arg3[%c4_31, %c0_32, %c0_33] : memref<5x1x128xf32, #tpu.memory_space<vmem>>, vector<1x1x128xf32>
    %45 = vector.shape_cast %44 : vector<1x1x128xf32> to vector<1x128xf32>
    %46 = vector.broadcast %45 : vector<1x128xf32> to vector<8x128xf32>
    %47 = arith.addf %43, %46 : vector<8x128xf32>
    %c1_34 = arith.constant 1 : index
    %c0_35 = arith.constant 0 : index
    %c0_36 = arith.constant 0 : index
    %48 = vector.load %arg4[%c1_34, %c0_35, %c0_36] : memref<2x8x128xf32, #tpu.memory_space<vmem>>, vector<1x8x128xf32>
    %49 = vector.shape_cast %48 : vector<1x8x128xf32> to vector<8x128xf32>
    %50 = vector.shape_cast %47 : vector<8x128xf32> to vector<1x8x128xf32>
    tpu.vector_store %arg4[%c1_34, %c0_35, %c0_36], %50 {strides = array<i32>} : memref<2x8x128xf32, #tpu.memory_space<vmem>>, vector<1x8x128xf32>,
    return
  }
  func.func @transform_0(%arg0: i32) -> (i32, i32) {
    %c0_i32 = arith.constant 0 : i32
    %c0_i32_0 = arith.constant 0 : i32
    return %arg0, %c0_i32 : i32, i32
  }
  func.func @transform_1(%arg0: i32) -> (i32, i32, i32) {
    %c0_i32 = arith.constant 0 : i32
    %c0_i32_0 = arith.constant 0 : i32
    %c0_i32_1 = arith.constant 0 : i32
    %c0_i32_2 = arith.constant 0 : i32
    return %c0_i32, %c0_i32_0, %c0_i32_1 : i32, i32, i32
  }
  func.func @transform_2(%arg0: i32) -> (i32, i32, i32) {
    %c0_i32 = arith.constant 0 : i32
    %c0_i32_0 = arith.constant 0 : i32
    %c0_i32_1 = arith.constant 0 : i32
    %c0_i32_2 = arith.constant 0 : i32
    return %c0_i32, %c0_i32_0, %c0_i32_1 : i32, i32, i32
  }
  func.func @transform_3(%arg0: i32) -> (i32, i32, i32) {
    %c0_i32 = arith.constant 0 : i32
    %c0_i32_0 = arith.constant 0 : i32
    %c0_i32_1 = arith.constant 0 : i32
    return %c0_i32, %arg0, %c0_i32_0 : i32, i32, i32
  }
}

</mosaic_0001>

<llo_original>
// kernel: tpu_custom_call.1
$region0: #{tpu_custom_call.1}
  #allocation0 [shape = 'u32[]', space=smem, size = 0x4, offset = 0x4, fixed_abs, tag = 'smem constant byte address 0x4 - core index']
  #allocation1 [shape = 'u32[72,128]{1,0:T(1,128)}', space=vmem, size = 0x9000, scoped, tag = 'internal scratch']
  %s0 = inlined_call_operand.hbm [shape: f32[8,128], index: 0, kind: input, shape index: {}]
  %s1 = inlined_call_operand.hbm [shape: bf16[5,128,128], index: 1, kind: input, shape index: {}]
  %s2 = inlined_call_operand.hbm [shape: f32[5,1,128], index: 2, kind: input, shape index: {}]
  %s3 = inlined_call_operand.hbm [shape: f32[2,8,128], index: 3, kind: output, shape index: {}]
  %s4 = sld [smem:[#allocation0]]
  $region34: #{tpu_custom_call.1} parent=0
    _
  %s6 = ssub.s32 1, %s4
  %s7 = scalar_select 0, %s6, %s4
  $region1: #{tpu_custom_call.1} parent=0
    #allocation2 [shape = 'u8[4096]{0}', space=vmem, size = 0x1000, scoped, tag = 'input window, operand 0, single buffered']
    #allocation3 [shape = 's32[1]{0}', space=sflag, size = 0x4, scoped, tag = 'scoped memory for tpu_custom_call.1']
    #allocation4 [shape = 's32[1]{0}', space=sflag, size = 0x4, scoped, tag = 'scoped memory for tpu_custom_call.1']
    #allocation5 [shape = 'u8[163840]{0}', space=vmem, size = 0x28000, scoped, tag = 'input window, operand 1, single buffered']
    #allocation6 [shape = 's32[1]{0}', space=sflag, size = 0x4, scoped, tag = 'scoped memory for tpu_custom_call.1']
    #allocation7 [shape = 'u8[2560]{0}', space=vmem, size = 0xc00, scoped, tag = 'input window, operand 2, single buffered']
    #allocation8 [shape = 'u8[8192]{0}', space=vmem, size = 0x2000, scoped, tag = 'output window, operand 0, single buffered']
    %8 = vsyncpa [#allocation3], 0
    %9 = vsyncpa [#allocation6], 0
    %10 = vsyncpa [#allocation4], 0
    // Predicated region
    $region2: #{tpu_custom_call.1} parent=1 // pred_check
      _
    $region3: #{tpu_custom_call.1} parent=1 // pred_check_branch
      %12 = sbr.rel (0) target = $region5
    $region4: #{tpu_custom_call.1} parent=1 // pred_region
      %14 = vsyncadd [#allocation3], 0
      %s16 = sshll.u32 %s0, 4
      %s17 = int_to_ptr.hbm [resolvable:$true] %s16
      %s18 = sshll.u32 [#allocation2], 4
      %s19 = int_to_ptr.vmem [resolvable:$true] %s18
      %21 = dma.hbm_to_vmem [thread:$0]  %s17, 128, %s19, [#allocation3]
    $region5: #{tpu_custom_call.1} parent=1 // pred_fallthru
      _
    // Predicated region
    $region6: #{tpu_custom_call.1} parent=1 // pred_check
      _
    $region7: #{tpu_custom_call.1} parent=1 // pred_check_branch
      %23 = sbr.rel (0) target = $region9
    $region8: #{tpu_custom_call.1} parent=1 // pred_region
      %25 = vsyncadd [#allocation6], 0
      %s26 = sshll.u32 %s1, 4
      %s27 = int_to_ptr.hbm [resolvable:$true] %s26
      %s28 = sshll.u32 [#allocation5], 4
      %s29 = int_to_ptr.vmem [resolvable:$true] %s28
      %34 = dma.hbm_to_vmem [thread:$0]  %s27, 5120, %s29, [#allocation6], 64, 64, 4
    $region9: #{tpu_custom_call.1} parent=1 // pred_fallthru
      _
    // Predicated region
    $region10: #{tpu_custom_call.1} parent=1 // pred_check
      _
    $region11: #{tpu_custom_call.1} parent=1 // pred_check_branch
      %36 = sbr.rel (0) target = $region13
    $region12: #{tpu_custom_call.1} parent=1 // pred_region
      %38 = vsyncadd [#allocation6], 0
      %s39 = sshll.u32 %s2, 4
      %s40 = int_to_ptr.hbm [resolvable:$true] %s39
      %s41 = sshll.u32 [#allocation7], 4
      %s42 = int_to_ptr.vmem [resolvable:$true] %s41
      %47 = dma.hbm_to_vmem [thread:$0]  %s40, 80, %s42, [#allocation6], 16, 16, 1
    $region13: #{tpu_custom_call.1} parent=1 // pred_fallthru
      _
    // Predicated region
    $region14: #{tpu_custom_call.1} parent=1 // pred_check
      _
    $region15: #{tpu_custom_call.1} parent=1 // pred_check_branch
      %49 = sbr.rel (0) target = $region17
    $region16: #{tpu_custom_call.1} parent=1 // pred_region
      %51 = dma.done [#allocation3], 128
    $region17: #{tpu_custom_call.1} parent=1 // pred_fallthru
      _
    // Predicated region
    $region18: #{tpu_custom_call.1} parent=1 // pred_check
      _
    $region19: #{tpu_custom_call.1} parent=1 // pred_check_branch
      %53 = sbr.rel (0) target = $region21
    $region20: #{tpu_custom_call.1} parent=1 // pred_region
      %55 = dma.done [#allocation6], 5120
    $region21: #{tpu_custom_call.1} parent=1 // pred_fallthru
      _
    // Predicated region
    $region22: #{tpu_custom_call.1} parent=1 // pred_check
      _
    $region23: #{tpu_custom_call.1} parent=1 // pred_check_branch
      %57 = sbr.rel (0) target = $region25
    $region24: #{tpu_custom_call.1} parent=1 // pred_region
      %59 = dma.done [#allocation6], 80
    $region25: #{tpu_custom_call.1} parent=1 // pred_fallthru
      _
    %v60 = vld [vmem:[#allocation2] sm:$0xff]
    %v61 = vpack.c.bf16 %v60, %v60
    %v62 = vld [vmem:[#allocation5] sm:$0xf]
    %v63 = vld [vmem:[#allocation5 + $0x4] sm:$0xf]
    %v64 = vld [vmem:[#allocation5 + $0x8] sm:$0xf]
    %v65 = vld [vmem:[#allocation5 + $0xc] sm:$0xf]
    %v66 = vld [vmem:[#allocation5 + $0x10] sm:$0xf]
    %v67 = vld [vmem:[#allocation5 + $0x14] sm:$0xf]
    %v68 = vld [vmem:[#allocation5 + $0x18] sm:$0xf]
    %v69 = vld [vmem:[#allocation5 + $0x1c] sm:$0xf]
    %v70 = vld [vmem:[#allocation5 + $0x20] sm:$0xf]
    %v71 = vld [vmem:[#allocation5 + $0x24] sm:$0xf]
    %v72 = vld [vmem:[#allocation5 + $0x28] sm:$0xf]
    %v73 = vld [vmem:[#allocation5 + $0x2c] sm:$0xf]
    %v74 = vld [vmem:[#allocation5 + $0x30] sm:$0xf]
    %v75 = vld [vmem:[#allocation5 + $0x34] sm:$0xf]
    %v76 = vld [vmem:[#allocation5 + $0x38] sm:$0xf]
    %v77 = vld [vmem:[#allocation5 + $0x3c] sm:$0xf]
    %v78 = vld [vmem:[#allocation7] sm:$0x1]
    %v80 = vperm.slane %v78, 0
    %v98 = vunpack.c.l.b16 %v62
    %v99 = vunpack.c.l.b16 %v63
    %v100 = vunpack.c.l.b16 %v64
    %v101 = vunpack.c.l.b16 %v65
    %v102 = vunpack.c.l.b16 %v66
    %v103 = vunpack.c.l.b16 %v67
    %v104 = vunpack.c.l.b16 %v68
    %v105 = vunpack.c.l.b16 %v69
    %v106 = vunpack.c.l.b16 %v70
    %v107 = vunpack.c.l.b16 %v71
    %v108 = vunpack.c.l.b16 %v72
    %v109 = vunpack.c.l.b16 %v73
    %v110 = vunpack.c.l.b16 %v74
    %v111 = vunpack.c.l.b16 %v75
    %v112 = vunpack.c.l.b16 %v76
    %v113 = vunpack.c.l.b16 %v77
    %v114 = vpack.c.b16 %v99, %v98
    %v115 = vpack.c.b16 %v101, %v100
    %v116 = vpack.c.b16 %v103, %v102
    %v117 = vpack.c.b16 %v105, %v104
    %v118 = vpack.c.b16 %v107, %v106
    %v119 = vpack.c.b16 %v109, %v108
    %v120 = vpack.c.b16 %v111, %v110
    %v121 = vpack.c.b16 %v113, %v112
    %130 = vmatpush.bf16.msra.mxu0 %v121
    %131 = vmatpush.bf16.msra.mxu0 %v120
    %132 = vmatpush.bf16.msra.mxu0 %v119
    %133 = vmatpush.bf16.msra.mxu0 %v118
    %134 = vmatpush.bf16.msra.mxu0 %v117
    %135 = vmatpush.bf16.msra.mxu0 %v116
    %136 = vmatpush.bf16.msra.mxu0 %v115
    %137 = vmatpush.bf16.msra.mxu0 %v114
    %138 = vmatmul.bf16.gmra.mxu0 %v61
    %v139 = vpop.f32.mrf.mxu0
    %v140 = vadd.f32 %v80, %v139
    %v141 = vpop.f32.mrf.mxu0
    %142 = vdwg.mxu0
    %v143 = vtanh.pop %v140
    %v144 = vpack.c.bf16 %v143, %v143
    %s145 = scalar_lea.vmem [#allocation5], 64
    %v146 = vld [vmem:[%s145] sm:$0xf]
    %v147 = vld [vmem:[%s145 + $0x4] sm:$0xf]
    %v148 = vld [vmem:[%s145 + $0x8] sm:$0xf]
    %v149 = vld [vmem:[%s145 + $0xc] sm:$0xf]
    %v150 = vld [vmem:[%s145 + $0x10] sm:$0xf]
    %v151 = vld [vmem:[%s145 + $0x14] sm:$0xf]
    %v152 = vld [vmem:[%s145 + $0x18] sm:$0xf]
    %v153 = vld [vmem:[%s145 + $0x1c] sm:$0xf]
    %v154 = vld [vmem:[%s145 + $0x20] sm:$0xf]
    %v155 = vld [vmem:[%s145 + $0x24] sm:$0xf]
    %v156 = vld [vmem:[%s145 + $0x28] sm:$0xf]
    %v157 = vld [vmem:[%s145 + $0x2c] sm:$0xf]
    %v158 = vld [vmem:[%s145 + $0x30] sm:$0xf]
    %v159 = vld [vmem:[%s145 + $0x34] sm:$0xf]
    %v160 = vld [vmem:[%s145 + $0x38] sm:$0xf]
    %v161 = vld [vmem:[%s145 + $0x3c] sm:$0xf]
    %s162 = scalar_lea.vmem [#allocation7], 1
    %v163 = vld [vmem:[%s162] sm:$0x1]
    %v165 = vperm.slane %v163, 0
    %v183 = vunpack.c.l.b16 %v146
    %v184 = vunpack.c.l.b16 %v147
    %v185 = vunpack.c.l.b16 %v148
    %v186 = vunpack.c.l.b16 %v149
    %v187 = vunpack.c.l.b16 %v150
    %v188 = vunpack.c.l.b16 %v151
    %v189 = vunpack.c.l.b16 %v152
    %v190 = vunpack.c.l.b16 %v153
    %v191 = vunpack.c.l.b16 %v154
    %v192 = vunpack.c.l.b16 %v155
    %v193 = vunpack.c.l.b16 %v156
    %v194 = vunpack.c.l.b16 %v157
    %v195 = vunpack.c.l.b16 %v158
    %v196 = vunpack.c.l.b16 %v159
    %v197 = vunpack.c.l.b16 %v160
    %v198 = vunpack.c.l.b16 %v161
    %v199 = vpack.c.b16 %v184, %v183
    %v200 = vpack.c.b16 %v186, %v185
    %v201 = vpack.c.b16 %v188, %v187
    %v202 = vpack.c.b16 %v190, %v189
    %v203 = vpack.c.b16 %v192, %v191
    %v204 = vpack.c.b16 %v194, %v193
    %v205 = vpack.c.b16 %v196, %v195
    %v206 = vpack.c.b16 %v198, %v197
    %215 = vmatpush.bf16.msra.mxu0 %v206
    %216 = vmatpush.bf16.msra.mxu0 %v205
    %217 = vmatpush.bf16.msra.mxu0 %v204
    %218 = vmatpush.bf16.msra.mxu0 %v203
    %219 = vmatpush.bf16.msra.mxu0 %v202
    %220 = vmatpush.bf16.msra.mxu0 %v201
    %221 = vmatpush.bf16.msra.mxu0 %v200
    %222 = vmatpush.bf16.msra.mxu0 %v199
    %223 = vmatmul.bf16.gmra.mxu0 %v144
    %v224 = vpop.f32.mrf.mxu0
    %v225 = vadd.f32 %v165, %v224
    %v226 = vpop.f32.mrf.mxu0
    %227 = vdwg.mxu0
    %v228 = vtanh.pop %v225
    %v229 = vpack.c.bf16 %v228, %v228
    %s230 = scalar_lea.vmem [#allocation5], 128
    %v231 = vld [vmem:[%s230] sm:$0xf]
    %v232 = vld [vmem:[%s230 + $0x4] sm:$0xf]
    %v233 = vld [vmem:[%s230 + $0x8] sm:$0xf]
    %v234 = vld [vmem:[%s230 + $0xc] sm:$0xf]
    %v235 = vld [vmem:[%s230 + $0x10] sm:$0xf]
    %v236 = vld [vmem:[%s230 + $0x14] sm:$0xf]
    %v237 = vld [vmem:[%s230 + $0x18] sm:$0xf]
    %v238 = vld [vmem:[%s230 + $0x1c] sm:$0xf]
    %v239 = vld [vmem:[%s230 + $0x20] sm:$0xf]
    %v240 = vld [vmem:[%s230 + $0x24] sm:$0xf]
    %v241 = vld [vmem:[%s230 + $0x28] sm:$0xf]
    %v242 = vld [vmem:[%s230 + $0x2c] sm:$0xf]
    %v243 = vld [vmem:[%s230 + $0x30] sm:$0xf]
    %v244 = vld [vmem:[%s230 + $0x34] sm:$0xf]
    %v245 = vld [vmem:[%s230 + $0x38] sm:$0xf]
    %v246 = vld [vmem:[%s230 + $0x3c] sm:$0xf]
    %s247 = scalar_lea.vmem [#allocation7], 2
    %v248 = vld [vmem:[%s247] sm:$0x1]
    %v250 = vperm.slane %v248, 0
    %v268 = vunpack.c.l.b16 %v231
    %v269 = vunpack.c.l.b16 %v232
    %v270 = vunpack.c.l.b16 %v233
    %v271 = vunpack.c.l.b16 %v234
    %v272 = vunpack.c.l.b16 %v235
    %v273 = vunpack.c.l.b16 %v236
    %v274 = vunpack.c.l.b16 %v237
    %v275 = vunpack.c.l.b16 %v238
    %v276 = vunpack.c.l.b16 %v239
    %v277 = vunpack.c.l.b16 %v240
    %v278 = vunpack.c.l.b16 %v241
    %v279 = vunpack.c.l.b16 %v242
    %v280 = vunpack.c.l.b16 %v243
    %v281 = vunpack.c.l.b16 %v244
    %v282 = vunpack.c.l.b16 %v245
    %v283 = vunpack.c.l.b16 %v246
    %v284 = vpack.c.b16 %v269, %v268
    %v285 = vpack.c.b16 %v271, %v270
    %v286 = vpack.c.b16 %v273, %v272
    %v287 = vpack.c.b16 %v275, %v274
    %v288 = vpack.c.b16 %v277, %v276
    %v289 = vpack.c.b16 %v279, %v278
    %v290 = vpack.c.b16 %v281, %v280
    %v291 = vpack.c.b16 %v283, %v282
    %300 = vmatpush.bf16.msra.mxu0 %v291
    %301 = vmatpush.bf16.msra.mxu0 %v290
    %302 = vmatpush.bf16.msra.mxu0 %v289
    %303 = vmatpush.bf16.msra.mxu0 %v288
    %304 = vmatpush.bf16.msra.mxu0 %v287
    %305 = vmatpush.bf16.msra.mxu0 %v286
    %306 = vmatpush.bf16.msra.mxu0 %v285
    %307 = vmatpush.bf16.msra.mxu0 %v284
    %308 = vmatmul.bf16.gmra.mxu0 %v229
    %v309 = vpop.f32.mrf.mxu0
    %v310 = vadd.f32 %v250, %v309
    %v311 = vpop.f32.mrf.mxu0
    %312 = vdwg.mxu0
    %313 = vst [vmem:[#allocation8] sm:$0xff] %v310
    %v314 = vtanh.pop %v310
    %v315 = vpack.c.bf16 %v314, %v314
    %s316 = scalar_lea.vmem [#allocation5], 192
    %v317 = vld [vmem:[%s316] sm:$0xf]
    %v318 = vld [vmem:[%s316 + $0x4] sm:$0xf]
    %v319 = vld [vmem:[%s316 + $0x8] sm:$0xf]
    %v320 = vld [vmem:[%s316 + $0xc] sm:$0xf]
    %v321 = vld [vmem:[%s316 + $0x10] sm:$0xf]
    %v322 = vld [vmem:[%s316 + $0x14] sm:$0xf]
    %v323 = vld [vmem:[%s316 + $0x18] sm:$0xf]
    %v324 = vld [vmem:[%s316 + $0x1c] sm:$0xf]
    %v325 = vld [vmem:[%s316 + $0x20] sm:$0xf]
    %v326 = vld [vmem:[%s316 + $0x24] sm:$0xf]
    %v327 = vld [vmem:[%s316 + $0x28] sm:$0xf]
    %v328 = vld [vmem:[%s316 + $0x2c] sm:$0xf]
    %v329 = vld [vmem:[%s316 + $0x30] sm:$0xf]
    %v330 = vld [vmem:[%s316 + $0x34] sm:$0xf]
    %v331 = vld [vmem:[%s316 + $0x38] sm:$0xf]
    %v332 = vld [vmem:[%s316 + $0x3c] sm:$0xf]
    %s333 = scalar_lea.vmem [#allocation7], 3
    %v334 = vld [vmem:[%s333] sm:$0x1]
    %v336 = vperm.slane %v334, 0
    %v354 = vunpack.c.l.b16 %v317
    %v355 = vunpack.c.l.b16 %v318
    %v356 = vunpack.c.l.b16 %v319
    %v357 = vunpack.c.l.b16 %v320
    %v358 = vunpack.c.l.b16 %v321
    %v359 = vunpack.c.l.b16 %v322
    %v360 = vunpack.c.l.b16 %v323
    %v361 = vunpack.c.l.b16 %v324
    %v362 = vunpack.c.l.b16 %v325
    %v363 = vunpack.c.l.b16 %v326
    %v364 = vunpack.c.l.b16 %v327
    %v365 = vunpack.c.l.b16 %v328
    %v366 = vunpack.c.l.b16 %v329
    %v367 = vunpack.c.l.b16 %v330
    %v368 = vunpack.c.l.b16 %v331
    %v369 = vunpack.c.l.b16 %v332
    %v370 = vpack.c.b16 %v355, %v354
    %v371 = vpack.c.b16 %v357, %v356
    %v372 = vpack.c.b16 %v359, %v358
    %v373 = vpack.c.b16 %v361, %v360
    %v374 = vpack.c.b16 %v363, %v362
    %v375 = vpack.c.b16 %v365, %v364
    %v376 = vpack.c.b16 %v367, %v366
    %v377 = vpack.c.b16 %v369, %v368
    %386 = vmatpush.bf16.msra.mxu0 %v377
    %387 = vmatpush.bf16.msra.mxu0 %v376
    %388 = vmatpush.bf16.msra.mxu0 %v375
    %389 = vmatpush.bf16.msra.mxu0 %v374
    %390 = vmatpush.bf16.msra.mxu0 %v373
    %391 = vmatpush.bf16.msra.mxu0 %v372
    %392 = vmatpush.bf16.msra.mxu0 %v371
    %393 = vmatpush.bf16.msra.mxu0 %v370
    %394 = vmatmul.bf16.gmra.mxu0 %v315
    %v395 = vpop.f32.mrf.mxu0
    %v396 = vadd.f32 %v336, %v395
    %v397 = vpop.f32.mrf.mxu0
    %398 = vdwg.mxu0
    %v399 = vtanh.pop %v396
    %v400 = vpack.c.bf16 %v399, %v399
    %s401 = scalar_lea.vmem [#allocation5], 256
    %v402 = vld [vmem:[%s401] sm:$0xf]
    %v403 = vld [vmem:[%s401 + $0x4] sm:$0xf]
    %v404 = vld [vmem:[%s401 + $0x8] sm:$0xf]
    %v405 = vld [vmem:[%s401 + $0xc] sm:$0xf]
    %v406 = vld [vmem:[%s401 + $0x10] sm:$0xf]
    %v407 = vld [vmem:[%s401 + $0x14] sm:$0xf]
    %v408 = vld [vmem:[%s401 + $0x18] sm:$0xf]
    %v409 = vld [vmem:[%s401 + $0x1c] sm:$0xf]
    %v410 = vld [vmem:[%s401 + $0x20] sm:$0xf]
    %v411 = vld [vmem:[%s401 + $0x24] sm:$0xf]
    %v412 = vld [vmem:[%s401 + $0x28] sm:$0xf]
    %v413 = vld [vmem:[%s401 + $0x2c] sm:$0xf]
    %v414 = vld [vmem:[%s401 + $0x30] sm:$0xf]
    %v415 = vld [vmem:[%s401 + $0x34] sm:$0xf]
    %v416 = vld [vmem:[%s401 + $0x38] sm:$0xf]
    %v417 = vld [vmem:[%s401 + $0x3c] sm:$0xf]
    %s418 = scalar_lea.vmem [#allocation7], 4
    %v419 = vld [vmem:[%s418] sm:$0x1]
    %v421 = vperm.slane %v419, 0
    %v439 = vunpack.c.l.b16 %v402
    %v440 = vunpack.c.l.b16 %v403
    %v441 = vunpack.c.l.b16 %v404
    %v442 = vunpack.c.l.b16 %v405
    %v443 = vunpack.c.l.b16 %v406
    %v444 = vunpack.c.l.b16 %v407
    %v445 = vunpack.c.l.b16 %v408
    %v446 = vunpack.c.l.b16 %v409
    %v447 = vunpack.c.l.b16 %v410
    %v448 = vunpack.c.l.b16 %v411
    %v449 = vunpack.c.l.b16 %v412
    %v450 = vunpack.c.l.b16 %v413
    %v451 = vunpack.c.l.b16 %v414
    %v452 = vunpack.c.l.b16 %v415
    %v453 = vunpack.c.l.b16 %v416
    %v454 = vunpack.c.l.b16 %v417
    %v455 = vpack.c.b16 %v440, %v439
    %v456 = vpack.c.b16 %v442, %v441
    %v457 = vpack.c.b16 %v444, %v443
    %v458 = vpack.c.b16 %v446, %v445
    %v459 = vpack.c.b16 %v448, %v447
    %v460 = vpack.c.b16 %v450, %v449
    %v461 = vpack.c.b16 %v452, %v451
    %v462 = vpack.c.b16 %v454, %v453
    %471 = vmatpush.bf16.msra.mxu0 %v462
    %472 = vmatpush.bf16.msra.mxu0 %v461
    %473 = vmatpush.bf16.msra.mxu0 %v460
    %474 = vmatpush.bf16.msra.mxu0 %v459
    %475 = vmatpush.bf16.msra.mxu0 %v458
    %476 = vmatpush.bf16.msra.mxu0 %v457
    %477 = vmatpush.bf16.msra.mxu0 %v456
    %478 = vmatpush.bf16.msra.mxu0 %v455
    %479 = vmatmul.bf16.gmra.mxu0 %v400
    %v480 = vpop.f32.mrf.mxu0
    %v481 = vadd.f32 %v421, %v480
    %v482 = vpop.f32.mrf.mxu0
    %483 = vdwg.mxu0
    %s484 = scalar_lea.vmem [#allocation8], 8
    %485 = vst [vmem:[%s484] sm:$0xff] %v481
    // Predicated region
    $region26: #{tpu_custom_call.1} parent=1 // pred_check
      _
    $region27: #{tpu_custom_call.1} parent=1 // pred_check_branch
      %487 = sbr.rel (0) target = $region29
    $region28: #{tpu_custom_call.1} parent=1 // pred_region
      %489 = vsyncadd [#allocation4], 0
      %s490 = sshll.u32 [#allocation8], 4
      %s491 = int_to_ptr.vmem [resolvable:$true] %s490
      %s492 = sshll.u32 %s3, 4
      %s493 = int_to_ptr.hbm [resolvable:$true] %s492
      %498 = dma.vmem_to_hbm [thread:$0]  %s491, 256, %s493, [#allocation4], 128, 128, 8
    $region29: #{tpu_custom_call.1} parent=1 // pred_fallthru
      _
    // Predicated region
    $region30: #{tpu_custom_call.1} parent=1 // pred_check
      _
    $region31: #{tpu_custom_call.1} parent=1 // pred_check_branch
      %500 = sbr.rel (0) target = $region33
    $region32: #{tpu_custom_call.1} parent=1 // pred_region
      %502 = dma.done [#allocation4], 256
    $region33: #{tpu_custom_call.1} parent=1 // pred_fallthru
      _
    %503 = vsyncpa [#allocation3], 1
    %504 = vsyncpa [#allocation6], 1
    %505 = vsyncpa [#allocation4], 1

</llo_original>
